<compile_context>
chip_gen: v7x
topology: tpu7x:2x2x1
jax: 0.10.0
libtpu: 0.0.40
codegen_flags: <defaults>
</compile_context>

<pallas_src>
import functools

import jax
import jax.numpy as jnp
from jax import lax
from jax.experimental import pallas as pl
from jax.experimental.pallas import tpu as pltpu

IGNORE_INDEX = -100       # HF seq2seq CE ignore index
_NEG_LARGE = -1e30        # finite stand-in for -inf (keeps exp/max NaN-free)


def _round_up(x, m):
    return (x + m - 1) // m * m


# ---------------------------------------------------------------------------
# Pallas kernel: fused (hidden @ W_vocab) -> online log-softmax -> label gather
#                -> masked per-row-tile (loss-sum, valid-count) partials
# ---------------------------------------------------------------------------
def _fused_ce_kernel(labels_ref, h_ref, w_ref, sum_ref, cnt_ref,
                     m_scr, l_scr, c_scr, *, tv, v_real):
    j = pl.program_id(1)                       # vocab-tile index (reduction axis)

    @pl.when(j == 0)
    def _init():
        m_scr[...] = jnp.full_like(m_scr, _NEG_LARGE)
        l_scr[...] = jnp.zeros_like(l_scr)
        c_scr[...] = jnp.zeros_like(c_scr)

    # (tm, tv) logits on the MXU: bf16 operands, f32 accumulation.
    logits = jnp.dot(h_ref[...], w_ref[...], preferred_element_type=jnp.float32)

    # global vocab column id of each lane in this tile
    col = j * tv + lax.broadcasted_iota(jnp.int32, logits.shape, 1)
    if v_real is not None:                     # static: only when V was padded
        logits = jnp.where(col < v_real, logits, _NEG_LARGE)

    labels = labels_ref[...]                   # (tm, 1) int32
    # logit of the label column if it lives in this vocab tile, else 0
    correct_j = jnp.sum(jnp.where(col == labels, logits, 0.0),
                        axis=-1, keepdims=True)           # (tm, 1)

    # online (flash-style) logsumexp update
    m_step = jnp.max(logits, axis=-1, keepdims=True)      # (tm, 1)
    m_new = jnp.maximum(m_scr[...], m_step)
    alpha = jnp.exp(m_scr[...] - m_new)
    l_scr[...] = alpha * l_scr[...] + jnp.sum(jnp.exp(logits - m_new),
                                              axis=-1, keepdims=True)
    m_scr[...] = m_new
    c_scr[...] = c_scr[...] + correct_j

    @pl.when(j == pl.num_programs(1) - 1)
    def _finish():
        valid = (labels != IGNORE_INDEX).astype(jnp.float32)       # (tm, 1)
        lse = m_scr[...] + jnp.log(l_scr[...])
        row_loss = (lse - c_scr[...]) * valid                      # (tm, 1)
        # lane-dense partial outputs; final cross-tile reduce happens in the wrapper
        sum_ref[...] = jnp.full(sum_ref.shape, jnp.sum(row_loss), jnp.float32)
        cnt_ref[...] = jnp.full(cnt_ref.shape, jnp.sum(valid), jnp.float32)


def _default_tiles():
    """Row tile tm / vocab tile tv sized to the local MXU generation."""
    try:
        kind = jax.devices()[0].device_kind.lower()
    except Exception:
        kind = ""
    if ("v6" in kind) or ("v7" in kind):
        return 256, 1024       # 2x256x256 MXU generations
    return 128, 512            # 128x128 MXU generations (v5e etc.)


def fused_cross_entropy(labels, hidden, w_vocab, *, tm=None, tv=None):
    """labels: (N,) or (N,1) int32; hidden: (N,H); w_vocab: (H,V).
    Returns (sum_of_per_token_losses, valid_token_count), both f32 scalars."""
    N, H = hidden.shape
    H2, V = w_vocab.shape
    assert H == H2

    d_tm, d_tv = _default_tiles()
    tm = d_tm if tm is None else tm
    tv = d_tv if tv is None else tv

    # clamp / align tiles to the actual problem and to (8, 128) tiling
    tm = min(tm, _round_up(N, 8))
    tv = min(tv, _round_up(V, 128))
    n_pad = _round_up(N, tm)
    v_pad = _round_up(V, tv)

    hidden = hidden.astype(jnp.bfloat16)
    w_vocab = w_vocab.astype(jnp.bfloat16)
    labels = labels.reshape(N, 1).astype(jnp.int32)

    if n_pad != N:
        hidden = jnp.pad(hidden, ((0, n_pad - N), (0, 0)))
        labels = jnp.pad(labels, ((0, n_pad - N), (0, 0)),
                         constant_values=IGNORE_INDEX)
    if v_pad != V:
        w_vocab = jnp.pad(w_vocab, ((0, 0), (0, v_pad - V)))

    g_m = n_pad // tm
    g_v = v_pad // tv

    kernel = functools.partial(_fused_ce_kernel, tv=tv,
                               v_real=(V if v_pad != V else None))

    grid_spec = pltpu.PrefetchScalarGridSpec(
        num_scalar_prefetch=0,
        grid=(g_m, g_v),
        in_specs=[
            pl.BlockSpec((tm, 1), lambda i, j: (i, 0)),    # labels tile
            pl.BlockSpec((tm, H), lambda i, j: (i, 0)),    # hidden tile (bf16)
            pl.BlockSpec((H, tv), lambda i, j: (0, j)),    # streamed W vocab tile
        ],
        out_specs=[
            pl.BlockSpec((1, 1, 128), lambda i, j: (i, 0, 0)),  # per-row-tile loss sum
            pl.BlockSpec((1, 1, 128), lambda i, j: (i, 0, 0)),  # per-row-tile count
        ],
        scratch_shapes=[
            pltpu.VMEM((tm, 1), jnp.float32),   # running max m
            pltpu.VMEM((tm, 1), jnp.float32),   # running sum-exp l
            pltpu.VMEM((tm, 1), jnp.float32),   # running "correct" logit
        ],
    )

    # VMEM budget: double-buffered bf16 h/W tiles + f32 logits + scratch + headroom,
    # capped below v7x's 64 MiB physical ceiling.
    tile_bytes = (2 * tm * H * 2) + (2 * H * tv * 2) + (tm * tv * 4) \
                 + (2 * tm * 4) + (3 * tm * 4) + (4 * 2 * 128 * 4)
    vmem_limit = min(max(2 * tile_bytes + (4 << 20), 16 << 20), 48 << 20)

    cost = pl.CostEstimate(
        flops=2 * n_pad * H * v_pad,
        transcendentals=n_pad * v_pad,
        bytes_accessed=(n_pad * H + g_m * H * v_pad) * 2 + n_pad * 4
                       + g_m * 2 * 128 * 4,
    )

    sum_part, cnt_part = pl.pallas_call(
        kernel,
        out_shape=(
            jax.ShapeDtypeStruct((g_m, 1, 128), jnp.float32),
            jax.ShapeDtypeStruct((g_m, 1, 128), jnp.float32),
        ),
        grid_spec=grid_spec,
        compiler_params=pltpu.CompilerParams(
            dimension_semantics=("parallel", "arbitrary"),
            vmem_limit_bytes=vmem_limit,
        ),
        cost_estimate=cost,
    )(labels, hidden, w_vocab)

    loss_sum = jnp.sum(sum_part[:, 0, 0])
    cnt = jnp.sum(cnt_part[:, 0, 0])
    return loss_sum, cnt


# ---------------------------------------------------------------------------
# Synthetic ASR model + ASRAttackLoss forward (glue in plain JAX)
# ---------------------------------------------------------------------------
def init_params(key, n_mels, hidden, vocab):
    k1, k2, k3 = jax.random.split(key, 3)
    return {
        "w_enc": jax.random.normal(k1, (n_mels, hidden), jnp.float32) * 0.1,
        "embed": jax.random.normal(k2, (vocab, hidden), jnp.float32) * 0.1,
        "w_out": jax.random.normal(k3, (hidden, vocab), jnp.float32) * 0.1,
        "bos_id": 0,
    }


def asr_attack_loss(audio_features, label_tokens, params, offset=0.0):
    """Equivalent of ASRAttackLoss.forward: offset - cross_entropy_loss(asr_model)."""
    # mimic `.to(torch.half)` on the processor features, then compute in f32
    x = audio_features.astype(jnp.float16).astype(jnp.float32)         # [B, n_mels, T]

    # TODO(synk): HF Whisper encoder/decoder + feature extractor/tokenizer are replaced
    # by this deterministic synthetic stand-in; only the CE-loss hot path is faithful.
    enc = jnp.einsum("bmt,mh->bth", x, params["w_enc"])                 # [B, T, H]
    enc = jnp.mean(jax.nn.gelu(enc), axis=1)                            # [B, H]

    # decoder inputs = labels shifted right with BOS (teacher forcing, as in HF)
    B, S = label_tokens.shape
    bos = jnp.full((B, 1), params["bos_id"], label_tokens.dtype)
    dec_in = jnp.concatenate([bos, label_tokens[:, :-1]], axis=1)       # [B, S]
    emb = params["embed"][dec_in]                                       # [B, S, H]
    hidden = jax.nn.gelu(emb + enc[:, None, :])                         # [B, S, H]

    H = hidden.shape[-1]
    hidden_2d = hidden.reshape(B * S, H)
    labels_1d = label_tokens.reshape(B * S)

    # TODO(synk): no custom VJP for the Pallas CE kernel; this computes the forward
    # attack-loss value only (grads would need a backward kernel or an XLA fallback).
    loss_sum, cnt = fused_cross_entropy(labels_1d, hidden_2d, params["w_out"])
    loss = loss_sum / jnp.maximum(cnt, 1.0)                             # mean CE (NaN-safe)
    return jnp.float32(offset) - loss


# ---------------------------------------------------------------------------
if __name__ == "__main__":
    B, n_mels, T = 2, 4, 16        # batch, mel bins, frames
    S, H, V = 8, 32, 128           # label seq len, hidden, vocab

    key = jax.random.PRNGKey(0)
    k_feat, k_lab, k_par = jax.random.split(key, 3)

    audio_features = jax.random.normal(k_feat, (B, n_mels, T), jnp.float32)
    label_tokens = jax.random.randint(k_lab, (B, S), 0, V, jnp.int32)
    params = init_params(k_par, n_mels, H, V)

    out = jax.jit(lambda a, l: asr_attack_loss(a, l, params, offset=0.5))(
        audio_features, label_tokens
    )
    out = jax.block_until_ready(out)

    # cross-check against plain-JAX reference (same bf16 matmul semantics)
    def ref(a, l):
        x = a.astype(jnp.float16).astype(jnp.float32)
        enc = jnp.mean(jax.nn.gelu(jnp.einsum("bmt,mh->bth", x, params["w_enc"])), axis=1)
        bos = jnp.full((l.shape[0], 1), params["bos_id"], l.dtype)
        dec_in = jnp.concatenate([bos, l[:, :-1]], axis=1)
        hid = jax.nn.gelu(params["embed"][dec_in] + enc[:, None, :])
        logits = jnp.dot(hid.reshape(-1, H).astype(jnp.bfloat16),
                         params["w_out"].astype(jnp.bfloat16),
                         preferred_element_type=jnp.float32)
        logp = jax.nn.log_softmax(logits, axis=-1)
        nll = -jnp.take_along_axis(logp, l.reshape(-1, 1), axis=-1)
        return 0.5 - jnp.mean(nll)

    ref_val = ref(audio_features, label_tokens)
    assert jnp.allclose(out, ref_val, atol=2e-3, rtol=1e-3), (out, ref_val)
    print("KERNEL_OK")
</pallas_src>

<mosaic_0001>
module attributes {stable_mosaic.version = 11 : i64} {
  func.func @_fused_ce_kernel(%arg0: i32, %arg1: i32, %arg2: memref<16x1xi32, #tpu.memory_space<vmem>>, %arg3: memref<16x32xbf16, #tpu.memory_space<vmem>>, %arg4: memref<32x128xbf16, #tpu.memory_space<vmem>>, %arg5: memref<1x1x128xf32, #tpu.memory_space<vmem>>, %arg6: memref<1x1x128xf32, #tpu.memory_space<vmem>>, %arg7: memref<16x1xf32, #tpu.memory_space<vmem>>, %arg8: memref<16x1xf32, #tpu.memory_space<vmem>>, %arg9: memref<16x1xf32, #tpu.memory_space<vmem>>) attributes {dimension_semantics = [#tpu.dimension_semantics<parallel>, #tpu.dimension_semantics<arbitrary>], iteration_bounds = array<i64: 1, 1>, scalar_prefetch = 0 : i64, scratch_operands = 3 : i64, tpu.core_type = #tpu.core_type<tc>, window_params = [{transform_indices = @transform_0, window_bounds = array<i64: 16, 1>}, {transform_indices = @transform_1, window_bounds = array<i64: 16, 32>}, {transform_indices = @transform_2, window_bounds = array<i64: 32, 128>}, {transform_indices = @transform_3, window_bounds = array<i64: 1, 1, 128>}, {transform_indices = @transform_4, window_bounds = array<i64: 1, 1, 128>}]} {
    %c0_i32 = arith.constant 0 : i32
    %0 = arith.cmpi eq, %arg1, %c0_i32 : i32
    %1 = arith.extui %0 : i1 to i32
    %c0_i32_0 = arith.constant 0 : i32
    %2 = arith.cmpi ne, %1, %c0_i32_0 : i32
    scf.if %2 {
      %cst_26 = arith.constant -1.000000e+30 : f32
      %40 = vector.broadcast %cst_26 : f32 to vector<16x1xf32>
      %c0_27 = arith.constant 0 : index
      %c0_28 = arith.constant 0 : index
      %41 = vector.load %arg7[%c0_27, %c0_28] : memref<16x1xf32, #tpu.memory_space<vmem>>, vector<16x1xf32>
      tpu.vector_store %arg7[%c0_27, %c0_28], %40 {strides = array<i32>} : memref<16x1xf32, #tpu.memory_space<vmem>>, vector<16x1xf32>,
      %cst_29 = arith.constant 0.000000e+00 : f32
      %42 = vector.broadcast %cst_29 : f32 to vector<16x1xf32>
      %c0_30 = arith.constant 0 : index
      %c0_31 = arith.constant 0 : index
      %43 = vector.load %arg8[%c0_30, %c0_31] : memref<16x1xf32, #tpu.memory_space<vmem>>, vector<16x1xf32>
      tpu.vector_store %arg8[%c0_30, %c0_31], %42 {strides = array<i32>} : memref<16x1xf32, #tpu.memory_space<vmem>>, vector<16x1xf32>,
      %cst_32 = arith.constant 0.000000e+00 : f32
      %44 = vector.broadcast %cst_32 : f32 to vector<16x1xf32>
      %c0_33 = arith.constant 0 : index
      %c0_34 = arith.constant 0 : index
      %45 = vector.load %arg9[%c0_33, %c0_34] : memref<16x1xf32, #tpu.memory_space<vmem>>, vector<16x1xf32>
      tpu.vector_store %arg9[%c0_33, %c0_34], %44 {strides = array<i32>} : memref<16x1xf32, #tpu.memory_space<vmem>>, vector<16x1xf32>,
    } else {
    }
    %c0 = arith.constant 0 : index
    %c0_1 = arith.constant 0 : index
    %3 = vector.load %arg3[%c0, %c0_1] : memref<16x32xbf16, #tpu.memory_space<vmem>>, vector<16x32xbf16>
    %c0_2 = arith.constant 0 : index
    %c0_3 = arith.constant 0 : index
    %4 = vector.load %arg4[%c0_2, %c0_3] : memref<32x128xbf16, #tpu.memory_space<vmem>>, vector<32x128xbf16>
    %cst = arith.constant dense<0.000000e+00> : vector<16x128xf32>
    %5 = tpu.matmul %3, %4, %cst {dimension_numbers = #tpu.dot_dimension_numbers<[1], [0], [0], [1], [0, 0, 1, 1], [], []>} : vector<16x32xbf16>, vector<32x128xbf16>, vector<16x128xf32> -> vector<16x128xf32>
    %c128_i32 = arith.constant 128 : i32
    %6 = arith.muli %arg1, %c128_i32 : i32
    %7 = tpu.iota {dimensions = array<i32: 1>} : vector<16x128xi32>
    %8 = vector.broadcast %6 : i32 to vector<16x128xi32>
    %9 = arith.addi %8, %7 : vector<16x128xi32>
    %c0_4 = arith.constant 0 : index
    %c0_5 = arith.constant 0 : index
    %10 = vector.load %arg2[%c0_4, %c0_5] : memref<16x1xi32, #tpu.memory_space<vmem>>, vector<16x1xi32>
    %11 = vector.broadcast %10 : vector<16x1xi32> to vector<16x128xi32>
    %12 = arith.cmpi eq, %9, %11 : vector<16x128xi32>
    %cst_6 = arith.constant 0.000000e+00 : f32
    %13 = vector.broadcast %cst_6 : f32 to vector<16x128xf32>
    %14 = arith.select %12, %5, %13 : vector<16x128xi1>, vector<16x128xf32>
    %cst_7 = arith.constant dense<0.000000e+00> : vector<16xf32>
    %15 = vector.multi_reduction <add>, %14, %cst_7 [1] : vector<16x128xf32> to vector<16xf32>
    %16 = vector.shape_cast %15 : vector<16xf32> to vector<16x1xf32>
    %cst_8 = arith.constant dense<0xFF800000> : vector<16xf32>
    %17 = vector.multi_reduction <maximumf>, %5, %cst_8 [1] : vector<16x128xf32> to vector<16xf32>
    %18 = vector.shape_cast %17 : vector<16xf32> to vector<16x1xf32>
    %c0_9 = arith.constant 0 : index
    %c0_10 = arith.constant 0 : index
    %19 = vector.load %arg7[%c0_9, %c0_10] : memref<16x1xf32, #tpu.memory_space<vmem>>, vector<16x1xf32>
    %20 = arith.maximumf %19, %18 : vector<16x1xf32>
    %c0_11 = arith.constant 0 : index
    %c0_12 = arith.constant 0 : index
    %21 = vector.load %arg7[%c0_11, %c0_12] : memref<16x1xf32, #tpu.memory_space<vmem>>, vector<16x1xf32>
    %22 = arith.subf %21, %20 : vector<16x1xf32>
    %23 = math.exp %22 : vector<16x1xf32>
    %c0_13 = arith.constant 0 : index
    %c0_14 = arith.constant 0 : index
    %24 = vector.load %arg8[%c0_13, %c0_14] : memref<16x1xf32, #tpu.memory_space<vmem>>, vector<16x1xf32>
    %25 = arith.mulf %23, %24 : vector<16x1xf32>
    %26 = vector.broadcast %20 : vector<16x1xf32> to vector<16x128xf32>
    %27 = arith.subf %5, %26 : vector<16x128xf32>
    %28 = math.exp %27 : vector<16x128xf32>
    %cst_15 = arith.constant dense<0.000000e+00> : vector<16xf32>
    %29 = vector.multi_reduction <add>, %28, %cst_15 [1] : vector<16x128xf32> to vector<16xf32>
    %30 = vector.shape_cast %29 : vector<16xf32> to vector<16x1xf32>
    %31 = arith.addf %25, %30 : vector<16x1xf32>
    %c0_16 = arith.constant 0 : index
    %c0_17 = arith.constant 0 : index
    %32 = vector.load %arg8[%c0_16, %c0_17] : memref<16x1xf32, #tpu.memory_space<vmem>>, vector<16x1xf32>
    tpu.vector_store %arg8[%c0_16, %c0_17], %31 {strides = array<i32>} : memref<16x1xf32, #tpu.memory_space<vmem>>, vector<16x1xf32>,
    %c0_18 = arith.constant 0 : index
    %c0_19 = arith.constant 0 : index
    %33 = vector.load %arg7[%c0_18, %c0_19] : memref<16x1xf32, #tpu.memory_space<vmem>>, vector<16x1xf32>
    tpu.vector_store %arg7[%c0_18, %c0_19], %20 {strides = array<i32>} : memref<16x1xf32, #tpu.memory_space<vmem>>, vector<16x1xf32>,
    %c0_20 = arith.constant 0 : index
    %c0_21 = arith.constant 0 : index
    %34 = vector.load %arg9[%c0_20, %c0_21] : memref<16x1xf32, #tpu.memory_space<vmem>>, vector<16x1xf32>
    %35 = arith.addf %34, %16 : vector<16x1xf32>
    %c0_22 = arith.constant 0 : index
    %c0_23 = arith.constant 0 : index
    %36 = vector.load %arg9[%c0_22, %c0_23] : memref<16x1xf32, #tpu.memory_space<vmem>>, vector<16x1xf32>
    tpu.vector_store %arg9[%c0_22, %c0_23], %35 {strides = array<i32>} : memref<16x1xf32, #tpu.memory_space<vmem>>, vector<16x1xf32>,
    %c0_i32_24 = arith.constant 0 : i32
    %37 = arith.cmpi eq, %arg1, %c0_i32_24 : i32
    %38 = arith.extui %37 : i1 to i32
    %c0_i32_25 = arith.constant 0 : i32
    %39 = arith.cmpi ne, %38, %c0_i32_25 : i32
    scf.if %39 {
      %c-100_i32 = arith.constant -100 : i32
      %40 = vector.broadcast %c-100_i32 : i32 to vector<16x1xi32>
      %41 = arith.cmpi ne, %10, %40 : vector<16x1xi32>
      %42 = arith.extui %41 : vector<16x1xi1> to vector<16x1xi32>
      %43 = arith.sitofp %42 : vector<16x1xi32> to vector<16x1xf32>
      %c0_26 = arith.constant 0 : index
      %c0_27 = arith.constant 0 : index
      %44 = vector.load %arg7[%c0_26, %c0_27] : memref<16x1xf32, #tpu.memory_space<vmem>>, vector<16x1xf32>
      %c0_28 = arith.constant 0 : index
      %c0_29 = arith.constant 0 : index
      %45 = vector.load %arg8[%c0_28, %c0_29] : memref<16x1xf32, #tpu.memory_space<vmem>>, vector<16x1xf32>
      %46 = math.log %45 : vector<16x1xf32>
      %47 = arith.addf %44, %46 : vector<16x1xf32>
      %c0_30 = arith.constant 0 : index
      %c0_31 = arith.constant 0 : index
      %48 = vector.load %arg9[%c0_30, %c0_31] : memref<16x1xf32, #tpu.memory_space<vmem>>, vector<16x1xf32>
      %49 = arith.subf %47, %48 : vector<16x1xf32>
      %50 = arith.mulf %49, %43 : vector<16x1xf32>
      %51 = vector.shape_cast %50 : vector<16x1xf32> to vector<1x16x1xf32>
      %cst_32 = arith.constant dense<0.000000e+00> : vector<1xf32>
      %52 = vector.multi_reduction <add>, %51, %cst_32 [1, 2] : vector<1x16x1xf32> to vector<1xf32>
      %53 = vector.shape_cast %52 : vector<1xf32> to vector<1x1x1xf32>
      %54 = vector.extract %53[0, 0, 0] : f32 from vector<1x1x1xf32>
      %55 = vector.broadcast %54 : f32 to vector<1x1x128xf32>
      %c0_33 = arith.constant 0 : index
      %c0_34 = arith.constant 0 : index
      %c0_35 = arith.constant 0 : index
      %56 = vector.load %arg5[%c0_33, %c0_34, %c0_35] : memref<1x1x128xf32, #tpu.memory_space<vmem>>, vector<1x1x128xf32>
      tpu.vector_store %arg5[%c0_33, %c0_34, %c0_35], %55 {strides = array<i32>} : memref<1x1x128xf32, #tpu.memory_space<vmem>>, vector<1x1x128xf32>,
      %57 = vector.shape_cast %43 : vector<16x1xf32> to vector<1x16x1xf32>
      %cst_36 = arith.constant dense<0.000000e+00> : vector<1xf32>
      %58 = vector.multi_reduction <add>, %57, %cst_36 [1, 2] : vector<1x16x1xf32> to vector<1xf32>
      %59 = vector.shape_cast %58 : vector<1xf32> to vector<1x1x1xf32>
      %60 = vector.extract %59[0, 0, 0] : f32 from vector<1x1x1xf32>
      %61 = vector.broadcast %60 : f32 to vector<1x1x128xf32>
      %c0_37 = arith.constant 0 : index
      %c0_38 = arith.constant 0 : index
      %c0_39 = arith.constant 0 : index
      %62 = vector.load %arg6[%c0_37, %c0_38, %c0_39] : memref<1x1x128xf32, #tpu.memory_space<vmem>>, vector<1x1x128xf32>
      tpu.vector_store %arg6[%c0_37, %c0_38, %c0_39], %61 {strides = array<i32>} : memref<1x1x128xf32, #tpu.memory_space<vmem>>, vector<1x1x128xf32>,
    } else {
    }
    return
  }
  func.func @transform_0(%arg0: i32, %arg1: i32) -> (i32, i32) {
    %c0_i32 = arith.constant 0 : i32
    %c0_i32_0 = arith.constant 0 : i32
    return %arg0, %c0_i32 : i32, i32
  }
  func.func @transform_1(%arg0: i32, %arg1: i32) -> (i32, i32) {
    %c0_i32 = arith.constant 0 : i32
    %c0_i32_0 = arith.constant 0 : i32
    return %arg0, %c0_i32 : i32, i32
  }
  func.func @transform_2(%arg0: i32, %arg1: i32) -> (i32, i32) {
    %c0_i32 = arith.constant 0 : i32
    %c0_i32_0 = arith.constant 0 : i32
    return %c0_i32, %arg1 : i32, i32
  }
  func.func @transform_3(%arg0: i32, %arg1: i32) -> (i32, i32, i32) {
    %c0_i32 = arith.constant 0 : i32
    %c0_i32_0 = arith.constant 0 : i32
    %c0_i32_1 = arith.constant 0 : i32
    return %arg0, %c0_i32, %c0_i32_0 : i32, i32, i32
  }
  func.func @transform_4(%arg0: i32, %arg1: i32) -> (i32, i32, i32) {
    %c0_i32 = arith.constant 0 : i32
    %c0_i32_0 = arith.constant 0 : i32
    %c0_i32_1 = arith.constant 0 : i32
    return %arg0, %c0_i32, %c0_i32_0 : i32, i32, i32
  }
}

</mosaic_0001>

<llo_original>
// kernel: _lambda_.1
$region0: #{_lambda_.1}
  #allocation0 [shape = 'u32[]', space=smem, size = 0x4, offset = 0x4, fixed_abs, tag = 'smem constant byte address 0x4 - core index']
  #allocation1 [shape = 'u32[144,128]{1,0:T(1,128)}', space=vmem, size = 0x12000, scoped, tag = 'internal scratch']
  #allocation2 [shape = 'f32[16,1]{1,0:T(8,128)}', space=vmem, size = 0x2000, scoped, tag = 'scratch operand']
  #allocation3 [shape = 'f32[16,1]{1,0:T(8,128)}', space=vmem, size = 0x2000, scoped, tag = 'scratch operand']
  #allocation4 [shape = 'f32[16,1]{1,0:T(8,128)}', space=vmem, size = 0x2000, scoped, tag = 'scratch operand']
  %s0 = inlined_call_operand.vmem [shape: s32[16,1], index: 0, kind: input, shape index: {}]
  %s1 = inlined_call_operand.vmem [shape: bf16[16,32], index: 1, kind: input, shape index: {}]
  %s2 = inlined_call_operand.vmem [shape: bf16[32,128], index: 2, kind: input, shape index: {}]
  %s3 = inlined_call_operand.vmem [shape: f32[1,1,128], index: 3, kind: output, shape index: {0}]
  %s4 = inlined_call_operand.vmem [shape: f32[1,1,128], index: 4, kind: output, shape index: {1}]
  %5 = xla_tuple %s3, %s4
  %s6 = sld [smem:[#allocation0]]
  $region38: #{_lambda_.1} parent=0
    _
  %s8 = ssub.s32 1, %s6
  %s9 = scalar_select 0, %s8, %s6
  // Predicated region
  $region2: #{_lambda_.1} parent=0 // pred_check
    _
  $region3: #{_lambda_.1} parent=0 // pred_check_branch
    %11 = sbr.rel (0) target = $region5
  $region4: #{_lambda_.1} parent=0 // pred_region
    _
  $region5: #{_lambda_.1} parent=0 // pred_fallthru
    _
  // Predicated region
  $region6: #{_lambda_.1} parent=0 // pred_check
    _
  $region7: #{_lambda_.1} parent=0 // pred_check_branch
    %13 = sbr.rel (0) target = $region9
  $region8: #{_lambda_.1} parent=0 // pred_region
    _
  $region9: #{_lambda_.1} parent=0 // pred_fallthru
    _
  // Predicated region
  $region10: #{_lambda_.1} parent=0 // pred_check
    _
  $region11: #{_lambda_.1} parent=0 // pred_check_branch
    %15 = sbr.rel (0) target = $region13
  $region12: #{_lambda_.1} parent=0 // pred_region
    _
  $region13: #{_lambda_.1} parent=0 // pred_fallthru
    _
  %p17 = scmp.eq.s32.totalorder 0, 0
  // Predicated region
  $region14: #{_lambda_.1} parent=0 // pred_check
    %p18 = pneg %p17
  $region15: #{_lambda_.1} parent=0 // pred_check_branch
    %20 = sbr.rel (%p18) target = $region17
  $region16: #{_lambda_.1} parent=0 // pred_region
    %vm21 = vcmask 7168
    %22 = vst.msk [vmem:[#allocation2] sm:$0xff] %vm21, -1e+30
    %23 = vst.msk [vmem:[#allocation2 + $0x8] sm:$0xff] %vm21, -1e+30
    %24 = vst.msk [vmem:[#allocation3] sm:$0xff] %vm21, 0.0
    %25 = vst.msk [vmem:[#allocation3 + $0x8] sm:$0xff] %vm21, 0.0
    %26 = vst.msk [vmem:[#allocation4] sm:$0xff] %vm21, 0.0
    %27 = vst.msk [vmem:[#allocation4 + $0x8] sm:$0xff] %vm21, 0.0
  $region17: #{_lambda_.1} parent=0 // pred_fallthru
    _
  %v28 = vld [vmem:[%s1] sm:$0xf]
  %v29 = vld [vmem:[%s1 + $0x4] sm:$0xf]
  %v30 = vld [vmem:[%s2] sm:$0xf]
  %v31 = vld [vmem:[%s2 + $0x4] sm:$0xf]
  %v32 = vld [vmem:[%s2 + $0x8] sm:$0xf]
  %v33 = vld [vmem:[%s2 + $0xc] sm:$0xf]
  %v36 = vunpack.c.l.b16 %v28
  %v37 = vunpack.c.l.b16 %v29
  %v38 = vpack.c.b16 %v37, %v36
  %v43 = vunpack.c.l.b16 %v30
  %v44 = vunpack.c.l.b16 %v31
  %v45 = vunpack.c.l.b16 %v32
  %v46 = vunpack.c.l.b16 %v33
  %v47 = vpack.c.b16 %v44, %v43
  %v48 = vpack.c.b16 %v46, %v45
  %vm51 = vcmask 261120
  %v53 = vsel %vm51, %v38, 0
  %55 = vmatprep.subr.bf16.mxu0 0
  %56 = vmatpush1.bf16.msra.mxu0 %v47
  %57 = vmatprep.subr.bf16.mxu0 0
  %58 = vmatpush1.bf16.msra.mxu0 %v48
  %59 = vmatprep.subr.bf16.mxu0 0
  %60 = vmatpush1.bf16.msra.mxu0 0
  %61 = vmatprep.subr.bf16.mxu0 0
  %62 = vmatpush1.bf16.msra.mxu0 0
  %63 = vmatprep.subr.bf16.mxu0 0
  %64 = vmatpush1.bf16.msra.mxu0 0
  %65 = vmatprep.subr.bf16.mxu0 0
  %66 = vmatpush1.bf16.msra.mxu0 0
  %67 = vmatprep.subr.bf16.mxu0 0
  %68 = vmatpush1.bf16.msra.mxu0 0
  %69 = vmatprep.subr.bf16.mxu0 0
  %70 = vmatpush1.bf16.msra.mxu0 0
  %71 = vmatprep.subr.bf16.mxu0 0
  %72 = vmatpush1.bf16.msra.mxu0 0
  %73 = vmatprep.subr.bf16.mxu0 0
  %74 = vmatpush1.bf16.msra.mxu0 0
  %75 = vmatprep.subr.bf16.mxu0 0
  %76 = vmatpush1.bf16.msra.mxu0 0
  %77 = vmatprep.subr.bf16.mxu0 0
  %78 = vmatpush1.bf16.msra.mxu0 0
  %79 = vmatprep.subr.bf16.mxu0 0
  %80 = vmatpush1.bf16.msra.mxu0 0
  %81 = vmatprep.subr.bf16.mxu0 0
  %82 = vmatpush1.bf16.msra.mxu0 0
  %83 = vmatprep.subr.bf16.mxu0 0
  %84 = vmatpush1.bf16.msra.mxu0 0
  %85 = vmatprep.subr.bf16.mxu0 0
  %86 = vmatpush1.bf16.msra.mxu0 0
  %87 = vmatprep.mubr.bf16.mxu0 0
  %88 = vmatmul.mubr.bf16.gmra.mrb[0].mxu0 %v53
  %v89 = vpop.f32.mrb[0].mxu0
  %v90 = vadd.f32 0.0, %v89
  %v91 = vpop.f32.mrb[0].mxu0
  %v92 = vpop.f32.mrb[0].mxu0
  %v93 = vadd.f32 0.0, %v92
  %v94 = vpop.f32.mrb[0].mxu0
  %95 = vdwg.mxu0
  %s96 = smul.u32 0, 128
  %v97 = vlaneseq
  %v98 = vand.u32 %v97, 127
  %v99 = vstv %s96
  %v100 = vadd.s32 %v99, %v98
  %v101 = vld [vmem:[%s0] sm:$0xff]
  %v102 = vld [vmem:[%s0 + $0x8] sm:$0xff]
  %103 = vset.pattern.permute.xlu0 0
  %104 = vperm.xlu0 %103, %v101
  %v105 = vpop.permute.xlu0 %104
  %106 = vset.pattern.permute.xlu0 0
  %107 = vperm.xlu0 %106, %v102
  %v108 = vpop.permute.xlu0 %107
  %vm109 = vcmp.eq.s32.totalorder %v100, %v105
  %vm110 = vcmp.eq.s32.totalorder %v100, %v108
  %v111 = vsel %vm109, %v90, 0.0
  %v112 = vsel %vm110, %v93, 0.0
  %113 = vadd.xlane.f32.xlu0 %v111
  %v114 = vpop.xlane.xlu0 %113
  %115 = vadd.xlane.f32.xlu0 %v112
  %v116 = vpop.xlane.xlu0 %115
  %117 = vmax.xlane.f32.xlu0 %v90
  %v118 = vpop.xlane.xlu0 %117
  %119 = vmax.xlane.f32.xlu0 %v93
  %v120 = vpop.xlane.xlu0 %119
  %v121 = vld [vmem:[#allocation2] sm:$0xff]
  %v122 = vld [vmem:[#allocation2 + $0x8] sm:$0xff]
  %v123 = vmax.f32 %v121, %v118
  %v124 = vmax.f32 %v122, %v120
  %v125 = vsub.f32 %v121, %v123
  %v126 = vsub.f32 %v122, %v124
  %v127 = vmul.f32 %v125, 1.442695
  %v128 = vpow.pop %v127
  %v129 = vmul.f32 %v126, 1.442695
  %v130 = vpow.pop %v129
  %v131 = vld [vmem:[#allocation3] sm:$0xff]
  %v132 = vld [vmem:[#allocation3 + $0x8] sm:$0xff]
  %v133 = vmul.f32 %v128, %v131
  %v134 = vmul.f32 %v130, %v132
  %136 = vset.pattern.permute.xlu0 0
  %137 = vperm.xlu0 %136, %v123
  %v138 = vpop.permute.xlu0 %137
  %141 = vset.pattern.permute.xlu0 0
  %142 = vperm.xlu0 %141, %v124
  %v143 = vpop.permute.xlu0 %142
  %v145 = vsub.f32 %v90, %v138
  %v146 = vsub.f32 %v93, %v143
  %v147 = vmul.f32 %v145, 1.442695
  %v148 = vpow.pop %v147
  %v149 = vmul.f32 %v146, 1.442695
  %v150 = vpow.pop %v149
  %151 = vadd.xlane.f32.xlu0 %v148
  %v152 = vpop.xlane.xlu0 %151
  %153 = vadd.xlane.f32.xlu0 %v150
  %v154 = vpop.xlane.xlu0 %153
  %v155 = vadd.f32 %v133, %v152
  %v156 = vadd.f32 %v134, %v154
  %vm157 = vcmask 7168
  %158 = vst.msk [vmem:[#allocation3] sm:$0xff] %vm157, %v155
  %159 = vst.msk [vmem:[#allocation3 + $0x8] sm:$0xff] %vm157, %v156
  %160 = vst.msk [vmem:[#allocation2] sm:$0xff] %vm157, %v123
  %161 = vst.msk [vmem:[#allocation2 + $0x8] sm:$0xff] %vm157, %v124
  %v162 = vld [vmem:[#allocation4] sm:$0xff]
  %v163 = vld [vmem:[#allocation4 + $0x8] sm:$0xff]
  %v164 = vadd.f32 %v162, %v114
  %v165 = vadd.f32 %v163, %v116
  %166 = vst.msk [vmem:[#allocation4] sm:$0xff] %vm157, %v164
  %167 = vst.msk [vmem:[#allocation4 + $0x8] sm:$0xff] %vm157, %v165
  // Predicated region
  $region18: #{_lambda_.1} parent=0 // pred_check
    %p168 = pneg %p17
  $region19: #{_lambda_.1} parent=0 // pred_check_branch
    %170 = sbr.rel (%p168) target = $region21
  $region20: #{_lambda_.1} parent=0 // pred_region
    %vm171 = vcmp.ne.s32.totalorder %v101, 4294967196
    %vm172 = vcmp.ne.s32.totalorder %v102, 4294967196
    %v173 = vsel %vm171, 1, 0
    %v174 = vsel %vm172, 1, 0
    %v175 = vcvt.s32.f32 %v173
    %v176 = vcvt.s32.f32 %v174
    %v177 = vld [vmem:[#allocation2] sm:$0xff]
    %v178 = vld [vmem:[#allocation2 + $0x8] sm:$0xff]
    %v179 = vld [vmem:[#allocation3] sm:$0xff]
    %v180 = vld [vmem:[#allocation3 + $0x8] sm:$0xff]
    %v181 = vlog2.pop %v179
    %v182 = vmul.f32 %v181, 0.6931472
    %v183 = vlog2.pop %v180
    %v184 = vmul.f32 %v183, 0.6931472
    %v185 = vadd.f32 %v177, %v182
    %v186 = vadd.f32 %v178, %v184
    %v187 = vld [vmem:[#allocation4] sm:$0xff]
    %v188 = vld [vmem:[#allocation4 + $0x8] sm:$0xff]
    %v189 = vsub.f32 %v185, %v187
    %v190 = vsub.f32 %v186, %v188
    %v191 = vmul.f32 %v189, %v175
    %v192 = vmul.f32 %v190, %v176
    %v193 = vsel %vm157, %v191, 0.0
    %v194 = vsel %vm157, %v192, 0.0
    %v195 = vadd.f32 %v193, %v194
    %196 = vadd.xlane.f32.xlu0 %v195
    %v197 = vpop.xlane.xlu0 %196
    %v198 = vrot.slane %v197, 4
    %v199 = vadd.f32 %v197, %v198
    %v200 = vrot.slane %v199, 2
    %v201 = vadd.f32 %v199, %v200
    %v202 = vrot.slane %v201, 1
    %v203 = vadd.f32 %v201, %v202
    %s204 = vtos %v203
    %v205 = vstv %s204
    %206 = vst [vmem:[%s3] sm:$0x1] %v205
    %v207 = vsel %vm157, %v175, 0.0
    %v208 = vsel %vm157, %v176, 0.0
    %v209 = vadd.f32 %v207, %v208
    %210 = vadd.xlane.f32.xlu0 %v209
    %v211 = vpop.xlane.xlu0 %210
    %v212 = vrot.slane %v211, 4
    %v213 = vadd.f32 %v211, %v212
    %v214 = vrot.slane %v213, 2
    %v215 = vadd.f32 %v213, %v214
    %v216 = vrot.slane %v215, 1
    %v217 = vadd.f32 %v215, %v216
    %s218 = vtos %v217
    %v219 = vstv %s218
    %220 = vst [vmem:[%s4] sm:$0x1] %v219
  $region21: #{_lambda_.1} parent=0 // pred_fallthru
    _
  // Predicated region
  $region22: #{_lambda_.1} parent=0 // pred_check
    _
  $region23: #{_lambda_.1} parent=0 // pred_check_branch
    %222 = sbr.rel (0) target = $region25
  $region24: #{_lambda_.1} parent=0 // pred_region
    _
  $region25: #{_lambda_.1} parent=0 // pred_fallthru
    _
  // Predicated region
  $region26: #{_lambda_.1} parent=0 // pred_check
    _
  $region27: #{_lambda_.1} parent=0 // pred_check_branch
    %224 = sbr.rel (0) target = $region29
  $region28: #{_lambda_.1} parent=0 // pred_region
    _
  $region29: #{_lambda_.1} parent=0 // pred_fallthru
    _
  // Predicated region
  $region30: #{_lambda_.1} parent=0 // pred_check
    _
  $region31: #{_lambda_.1} parent=0 // pred_check_branch
    %226 = sbr.rel (0) target = $region33
  $region32: #{_lambda_.1} parent=0 // pred_region
    _
  $region33: #{_lambda_.1} parent=0 // pred_fallthru
    _
  // Predicated region
  $region34: #{_lambda_.1} parent=0 // pred_check
    _
  $region35: #{_lambda_.1} parent=0 // pred_check_branch
    %228 = sbr.rel (0) target = $region37
  $region36: #{_lambda_.1} parent=0 // pred_region
    _
  $region37: #{_lambda_.1} parent=0 // pred_fallthru
    _

</llo_original>
